<compile_context>
chip_gen: v7x
topology: tpu7x:2x2x1
jax: 0.10.0
libtpu: 0.0.40
codegen_flags: <defaults>
</compile_context>

<pallas_src>
import functools

import jax
import jax.numpy as jnp
from jax.experimental import pallas as pl
from jax.experimental.pallas import tpu as pltpu


def _round_up(v, m):
    return -(-v // m) * m


def _convblock_kernel(x_ref, w_ref, shift_ref, o_ref, slab_ref, *,
                      dilation, k_taps, b_tile, r_rows, s_stride):
    """One grid step = b_tile batch elements.

    x_ref:     (R, W)                  input, batches side by side with lane
                                       stride S, zero halo tail.  compute dtype.
    w_ref:     (C_out_pad, K*R)        im2col conv weight, BN scale folded.
    shift_ref: (C_out_pad, 1) f32      folded conv bias + BN shift.
    o_ref:     (b_tile, C_out_pad, S)  output, already in final layout (f32).
    slab_ref:  (K*R, b_tile*S)         VMEM scratch, compute dtype.
    """
    width = b_tile * s_stride

    # im2col slab: K full-width, lane/sublane aligned stores (one per tap).
    # ReLU is fused here (zero padding is ReLU-invariant).
    # TODO(synk): nn.Dropout(0.1) in train mode has no deterministic Pallas
    # equivalent; eval-mode (identity) semantics are implemented here.
    for t in range(k_taps):
        src = x_ref[:, pl.ds(t * dilation, width)]               # (R, width)
        slab_ref[pl.ds(t * r_rows, r_rows), :] = jnp.maximum(src, 0.0)

    w = w_ref[...]
    shift = shift_ref[...]

    # MXU: (C_out_pad, K*R) x (K*R, chunk) over >=512-lane chunks, then
    # per-batch lane-aligned stores straight into the final output layout.
    bg = max(1, 512 // s_stride)                                 # batches / dot
    for b0 in range(0, b_tile, bg):
        nb_c = min(bg, b_tile - b0)
        acc = jnp.dot(w,
                      slab_ref[:, pl.ds(b0 * s_stride, nb_c * s_stride)],
                      preferred_element_type=jnp.float32)
        acc = acc + shift                                        # fused BN shift
        for bb in range(nb_c):
            o_ref[b0 + bb] = acc[:, bb * s_stride:(bb + 1) * s_stride].astype(
                o_ref.dtype)


def convblock_forward(x, weight, bias, gamma, beta, running_mean, running_var,
                      *, dilation, eps=1e-5, compute_dtype=jnp.float32):
    """x: (N, C_in, L) f32.  weight: (C_out, C_in, K).  Returns (N, C_out, L_out)."""
    n, c_in, length = x.shape
    c_out, c_in_w, k = weight.shape
    assert c_in_w == c_in, "weight/input channel mismatch"
    pad = (k - 1) * dilation // 2
    l_pad = length + 2 * pad
    l_out = l_pad - dilation * (k - 1)
    assert l_out > 0

    cbytes = jnp.dtype(compute_dtype).itemsize
    low_prec = cbytes < 4
    r_rows = _round_up(c_in, 8)                       # sublane stride per tap
    c_out_pad = _round_up(c_out, 16 if low_prec else 8)
    s_stride = _round_up(l_pad, 128)                  # lane stride per batch
    halo = (k - 1) * dilation
    halo_pad = _round_up(halo, 128) if halo > 0 else 0

    # ---- Fold BatchNorm(eval) + conv bias into weights / shift --------------
    scale = (gamma / jnp.sqrt(running_var + eps)).astype(jnp.float32)   # (C_out,)
    shift = (beta + (bias - running_mean) * scale).astype(jnp.float32)  # (C_out,)
    w_t = jnp.transpose(weight * scale[:, None, None], (0, 2, 1))       # (Co,K,Ci)
    w_t = jnp.pad(w_t, ((0, c_out_pad - c_out), (0, 0), (0, r_rows - c_in)))
    w_col = w_t.reshape(c_out_pad, k * r_rows).astype(compute_dtype)
    shift2 = jnp.pad(shift, (0, c_out_pad - c_out)).reshape(c_out_pad, 1)

    # ---- Generation-aware VMEM budget + b_tile selection ---------------------
    vmem_phys = 128 * 1024 * 1024
    try:
        vmem_phys = int(getattr(pltpu.get_tpu_info(), "vmem_capacity_bytes",
                                vmem_phys))
    except Exception:
        pass
    vmem_limit = min(64 * 1024 * 1024, max(16 * 1024 * 1024, vmem_phys // 2))
    budget = int(0.6 * vmem_limit)

    def vmem_estimate(bt):
        w_in = bt * s_stride + halo_pad
        x_blk = r_rows * w_in * cbytes
        o_blk = bt * c_out_pad * s_stride * 4
        w_blk = c_out_pad * k * r_rows * cbytes + c_out_pad * 4
        slab = k * r_rows * bt * s_stride * cbytes
        acc = c_out_pad * min(bt * s_stride, 512) * 4
        return 2 * (x_blk + o_blk + w_blk) + slab + 2 * acc

    b_tile = max(1, -(-1024 // s_stride))             # target >= 1024 lanes/slab
    b_tile = min(b_tile, max(1, 4096 // s_stride))    # bound unroll / vregs
    b_tile = min(b_tile, n)
    if n >= 2:
        b_tile = min(b_tile, -(-n // 2))              # nb >= 2: feed both v7x TCs
    while b_tile > 1 and vmem_estimate(b_tile) > budget:
        b_tile -= 1
    vmem_limit = int(min(vmem_phys,
                         max(vmem_limit, vmem_estimate(b_tile) + 4 * 1024 * 1024)))

    nb = -(-n // b_tile)
    n_pad = nb * b_tile
    w_in = b_tile * s_stride + halo_pad

    # ---- Lay x out once (single wrapper pass; also the bf16 cast point) -----
    # (nb, R, W): each batch's zero-padded window at lane offset b*S, zero halo
    # tail, zero channel-padding rows -> every tap is one full-width slice.
    # TODO(synk): a fully pad-free variant would fetch x unpadded and mask edge
    # taps in-kernel; at MPRA scales the single wrapper pass is cheaper.
    x_p = jnp.pad(x.astype(compute_dtype),
                  ((0, n_pad - n), (0, r_rows - c_in),
                   (pad, s_stride - length - pad)))               # (n_pad, R, S)
    x_cat = x_p.reshape(nb, b_tile, r_rows, s_stride)
    x_cat = jnp.transpose(x_cat, (0, 2, 1, 3)).reshape(nb, r_rows,
                                                       b_tile * s_stride)
    x_cat = jnp.pad(x_cat, ((0, 0), (0, 0), (0, halo_pad)))       # (nb, R, W)

    kernel = functools.partial(
        _convblock_kernel, dilation=dilation, k_taps=k, b_tile=b_tile,
        r_rows=r_rows, s_stride=s_stride)

    out_raw = pl.pallas_call(
        kernel,
        out_shape=jax.ShapeDtypeStruct((n_pad, c_out_pad, s_stride), x.dtype),
        grid_spec=pltpu.PrefetchScalarGridSpec(
            num_scalar_prefetch=0,
            grid=(nb,),
            in_specs=[
                pl.BlockSpec((None, r_rows, w_in), lambda i: (i, 0, 0)),
                # Constant index_map -> weight & shift stay VMEM-resident.
                pl.BlockSpec((c_out_pad, k * r_rows), lambda i: (0, 0)),
                pl.BlockSpec((c_out_pad, 1), lambda i: (0, 0)),
            ],
            out_specs=pl.BlockSpec((b_tile, c_out_pad, s_stride),
                                   lambda i: (i, 0, 0)),
            scratch_shapes=[
                pltpu.VMEM((k * r_rows, b_tile * s_stride), compute_dtype)],
        ),
        compiler_params=pltpu.CompilerParams(
            dimension_semantics=("parallel",),        # megacore-shard batch tiles
            vmem_limit_bytes=vmem_limit),
    )(x_cat, w_col, shift2)

    # Output already in final layout; just slice off the alignment padding.
    return out_raw[:n, :c_out, :l_out]


def _reference_forward(x, weight, bias, gamma, beta, running_mean, running_var,
                       *, dilation, eps=1e-5):
    """Pure-JAX reference (eval-mode Convblock)."""
    k = weight.shape[2]
    pad = (k - 1) * dilation // 2
    h = jnp.maximum(x, 0.0)
    y = jax.lax.conv_general_dilated(
        h, weight, window_strides=(1,), padding=[(pad, pad)],
        rhs_dilation=(dilation,), dimension_numbers=("NCH", "OIH", "NCH"))
    y = y + bias[None, :, None]
    y = (y - running_mean[None, :, None]) / jnp.sqrt(
        running_var[None, :, None] + eps)
    return y * gamma[None, :, None] + beta[None, :, None]


if __name__ == "__main__":
    key = jax.random.PRNGKey(0)

    def make_params(k_param, c, ksize):
        ks = jax.random.split(k_param, 6)
        weight = jax.random.normal(ks[0], (c, c, ksize), dtype=jnp.float32) * 0.1
        bias = jax.random.normal(ks[1], (c,), dtype=jnp.float32) * 0.1
        gamma = 1.0 + 0.1 * jax.random.normal(ks[2], (c,), dtype=jnp.float32)
        beta = 0.1 * jax.random.normal(ks[3], (c,), dtype=jnp.float32)
        rmean = 0.1 * jax.random.normal(ks[4], (c,), dtype=jnp.float32)
        rvar = jnp.abs(jax.random.normal(ks[5], (c,), dtype=jnp.float32)) + 0.5
        return weight, bias, gamma, beta, rmean, rvar

    k0, k1, k2, k3 = jax.random.split(key, 4)

    # --- main config: batch=2, channels=8, seq=32, kernel=3, dilation=2 ------
    batch, in_channel, seq_len = 2, 8, 32
    kernel_size, dilate_size = 3, 2
    x = jax.random.normal(k0, (batch, in_channel, seq_len), dtype=jnp.float32)
    params = make_params(k1, in_channel, kernel_size)

    ref = _reference_forward(x, *params, dilation=dilate_size)

    out_f32 = jax.block_until_ready(convblock_forward(
        x, *params, dilation=dilate_size, compute_dtype=jnp.float32))
    assert out_f32.shape == ref.shape
    assert jnp.allclose(out_f32, ref, atol=1e-4, rtol=1e-4), "f32 mismatch"

    out_bf16 = jax.block_until_ready(convblock_forward(
        x, *params, dilation=dilate_size, compute_dtype=jnp.bfloat16))
    assert out_bf16.shape == ref.shape
    assert jnp.allclose(out_bf16, ref, atol=5e-2, rtol=5e-2), "bf16 mismatch"

    # --- asymmetric-"same" ((K-1)*D odd) + channel/batch padding config ------
    batch2, chan2, len2, ks2, ds2 = 3, 12, 40, 2, 3
    x2 = jax.random.normal(k2, (batch2, chan2, len2), dtype=jnp.float32)
    params2 = make_params(k3, chan2, ks2)
    ref2 = _reference_forward(x2, *params2, dilation=ds2)
    out2 = jax.block_until_ready(convblock_forward(
        x2, *params2, dilation=ds2, compute_dtype=jnp.float32))
    assert out2.shape == ref2.shape
    assert jnp.allclose(out2, ref2, atol=1e-4, rtol=1e-4), "config-2 mismatch"

    print("KERNEL_OK")
</pallas_src>

<mosaic_0001>
module attributes {stable_mosaic.version = 11 : i64} {
  func.func @_convblock_kernel(%arg0: i32, %arg1: memref<1x8x256xf32, #tpu.memory_space<vmem>>, %arg2: memref<8x24xf32, #tpu.memory_space<vmem>>, %arg3: memref<8x1xf32, #tpu.memory_space<vmem>>, %arg4: memref<1x8x128xf32, #tpu.memory_space<vmem>>, %arg5: memref<24x128xf32, #tpu.memory_space<vmem>>) attributes {dimension_semantics = [#tpu.dimension_semantics<parallel>], iteration_bounds = array<i64: 2>, scalar_prefetch = 0 : i64, scratch_operands = 1 : i64, tpu.core_type = #tpu.core_type<tc>, window_params = [{transform_indices = @transform_0, window_bounds = array<i64: 1, 8, 256>}, {pipeline_mode = #tpu.pipeline_mode<synchronous>, transform_indices = @transform_1, window_bounds = array<i64: 8, 24>}, {pipeline_mode = #tpu.pipeline_mode<synchronous>, transform_indices = @transform_2, window_bounds = array<i64: 8, 1>}, {transform_indices = @transform_3, window_bounds = array<i64: 1, 8, 128>}]} {
    %c0 = arith.constant 0 : index
    %c0_0 = arith.constant 0 : index
    %c0_1 = arith.constant 0 : index
    %0 = vector.load %arg1[%c0, %c0_0, %c0_1] : memref<1x8x256xf32, #tpu.memory_space<vmem>>, vector<1x8x128xf32>
    %1 = vector.shape_cast %0 : vector<1x8x128xf32> to vector<8x128xf32>
    %cst = arith.constant 0.000000e+00 : f32
    %2 = vector.broadcast %cst : f32 to vector<8x128xf32>
    %3 = arith.maximumf %1, %2 : vector<8x128xf32>
    %c0_2 = arith.constant 0 : index
    %c0_3 = arith.constant 0 : index
    %4 = vector.load %arg5[%c0_2, %c0_3] : memref<24x128xf32, #tpu.memory_space<vmem>>, vector<8x128xf32>
    tpu.vector_store %arg5[%c0_2, %c0_3], %3 {strides = array<i32>} : memref<24x128xf32, #tpu.memory_space<vmem>>, vector<8x128xf32>,
    %c0_4 = arith.constant 0 : index
    %c0_5 = arith.constant 0 : index
    %c2 = arith.constant 2 : index
    %5 = vector.load %arg1[%c0_4, %c0_5, %c2] : memref<1x8x256xf32, #tpu.memory_space<vmem>>, vector<1x8x128xf32>
    %6 = vector.shape_cast %5 : vector<1x8x128xf32> to vector<8x128xf32>
    %cst_6 = arith.constant 0.000000e+00 : f32
    %7 = vector.broadcast %cst_6 : f32 to vector<8x128xf32>
    %8 = arith.maximumf %6, %7 : vector<8x128xf32>
    %c8 = arith.constant 8 : index
    %c0_7 = arith.constant 0 : index
    %9 = vector.load %arg5[%c8, %c0_7] : memref<24x128xf32, #tpu.memory_space<vmem>>, vector<8x128xf32>
    tpu.vector_store %arg5[%c8, %c0_7], %8 {strides = array<i32>} : memref<24x128xf32, #tpu.memory_space<vmem>>, vector<8x128xf32>,
    %c0_8 = arith.constant 0 : index
    %c0_9 = arith.constant 0 : index
    %c4 = arith.constant 4 : index
    %10 = vector.load %arg1[%c0_8, %c0_9, %c4] : memref<1x8x256xf32, #tpu.memory_space<vmem>>, vector<1x8x128xf32>
    %11 = vector.shape_cast %10 : vector<1x8x128xf32> to vector<8x128xf32>
    %cst_10 = arith.constant 0.000000e+00 : f32
    %12 = vector.broadcast %cst_10 : f32 to vector<8x128xf32>
    %13 = arith.maximumf %11, %12 : vector<8x128xf32>
    %c16 = arith.constant 16 : index
    %c0_11 = arith.constant 0 : index
    %14 = vector.load %arg5[%c16, %c0_11] : memref<24x128xf32, #tpu.memory_space<vmem>>, vector<8x128xf32>
    tpu.vector_store %arg5[%c16, %c0_11], %13 {strides = array<i32>} : memref<24x128xf32, #tpu.memory_space<vmem>>, vector<8x128xf32>,
    %c0_12 = arith.constant 0 : index
    %c0_13 = arith.constant 0 : index
    %15 = vector.load %arg2[%c0_12, %c0_13] : memref<8x24xf32, #tpu.memory_space<vmem>>, vector<8x24xf32>
    %c0_14 = arith.constant 0 : index
    %c0_15 = arith.constant 0 : index
    %16 = vector.load %arg3[%c0_14, %c0_15] : memref<8x1xf32, #tpu.memory_space<vmem>>, vector<8x1xf32>
    %c0_16 = arith.constant 0 : index
    %c0_17 = arith.constant 0 : index
    %17 = vector.load %arg5[%c0_16, %c0_17] : memref<24x128xf32, #tpu.memory_space<vmem>>, vector<24x128xf32>
    %cst_18 = arith.constant dense<0.000000e+00> : vector<8x128xf32>
    %18 = tpu.matmul %15, %17, %cst_18 {dimension_numbers = #tpu.dot_dimension_numbers<[1], [0], [0], [1], [0, 0, 1, 1], [], []>} : vector<8x24xf32>, vector<24x128xf32>, vector<8x128xf32> -> vector<8x128xf32>
    %19 = vector.broadcast %16 : vector<8x1xf32> to vector<8x128xf32>
    %20 = arith.addf %18, %19 : vector<8x128xf32>
    %c0_19 = arith.constant 0 : index
    %c0_20 = arith.constant 0 : index
    %c0_21 = arith.constant 0 : index
    %21 = vector.load %arg4[%c0_19, %c0_20, %c0_21] : memref<1x8x128xf32, #tpu.memory_space<vmem>>, vector<1x8x128xf32>
    %22 = vector.shape_cast %21 : vector<1x8x128xf32> to vector<8x128xf32>
    %23 = vector.shape_cast %20 : vector<8x128xf32> to vector<1x8x128xf32>
    tpu.vector_store %arg4[%c0_19, %c0_20, %c0_21], %23 {strides = array<i32>} : memref<1x8x128xf32, #tpu.memory_space<vmem>>, vector<1x8x128xf32>,
    return
  }
  func.func @transform_0(%arg0: i32) -> (i32, i32, i32) {
    %c0_i32 = arith.constant 0 : i32
    %c0_i32_0 = arith.constant 0 : i32
    %c0_i32_1 = arith.constant 0 : i32
    return %arg0, %c0_i32, %c0_i32_0 : i32, i32, i32
  }
  func.func @transform_1(%arg0: i32) -> (i32, i32) {
    %c0_i32 = arith.constant 0 : i32
    %c0_i32_0 = arith.constant 0 : i32
    %c0_i32_1 = arith.constant 0 : i32
    return %c0_i32, %c0_i32_0 : i32, i32
  }
  func.func @transform_2(%arg0: i32) -> (i32, i32) {
    %c0_i32 = arith.constant 0 : i32
    %c0_i32_0 = arith.constant 0 : i32
    %c0_i32_1 = arith.constant 0 : i32
    return %c0_i32, %c0_i32_0 : i32, i32
  }
  func.func @transform_3(%arg0: i32) -> (i32, i32, i32) {
    %c0_i32 = arith.constant 0 : i32
    %c0_i32_0 = arith.constant 0 : i32
    %c0_i32_1 = arith.constant 0 : i32
    return %arg0, %c0_i32, %c0_i32_0 : i32, i32, i32
  }
}

</mosaic_0001>

<llo_original>
// kernel: tpu_custom_call.1
$region0: #{tpu_custom_call.1}
  #allocation0 [shape = 'u32[]', space=smem, size = 0x4, offset = 0x4, fixed_abs, tag = 'smem constant byte address 0x4 - core index']
  #allocation1 [shape = 'u32[144,128]{1,0:T(1,128)}', space=vmem, size = 0x12000, scoped, tag = 'internal scratch']
  #allocation2 [shape = 'f32[24,128]{1,0:T(8,128)}', space=vmem, size = 0x3000, scoped, tag = 'scratch operand']
  %s0 = inlined_call_operand.hbm [shape: f32[2,8,256], index: 0, kind: input, shape index: {}]
  %s1 = inlined_call_operand.hbm [shape: f32[8,24], index: 1, kind: input, shape index: {}]
  %s2 = inlined_call_operand.hbm [shape: f32[8,1], index: 2, kind: input, shape index: {}]
  %s3 = inlined_call_operand.hbm [shape: f32[2,8,128], index: 3, kind: output, shape index: {}]
  %s4 = sld [smem:[#allocation0]]
  $region57: #{tpu_custom_call.1} parent=0
    _
  %s6 = ssub.s32 1, %s4
  %s7 = scalar_select 0, %s6, %s4
  $region1: #{tpu_custom_call.1} parent=0
    #allocation3 [shape = 'u8[16384]{0}', space=vmem, size = 0x4000, scoped, tag = 'input window, operand 0']
    #allocation4 [shape = 's32[2]{0}', space=sflag, size = 0x8, scoped, tag = 'scoped memory for tpu_custom_call.1']
    #allocation5 [shape = 's32[2]{0}', space=sflag, size = 0x8, scoped, tag = 'scoped memory for tpu_custom_call.1']
    #allocation6 [shape = 'u8[4096]{0}', space=vmem, size = 0x1000, scoped, tag = 'input window, operand 1, single buffered']
    #allocation7 [shape = 's32[1]{0}', space=sflag, size = 0x4, scoped, tag = 'scoped memory for tpu_custom_call.1']
    #allocation8 [shape = 'u8[4096]{0}', space=vmem, size = 0x1000, scoped, tag = 'input window, operand 2, single buffered']
    #allocation9 [shape = 'u8[8192]{0}', space=vmem, size = 0x2000, scoped, tag = 'output window, operand 0']
    %8 = vsyncpa [#allocation4], 0
    %s9 = scalar_lea.sflag [#allocation4], 1
    %10 = vsyncpa %s9, 0
    %11 = vsyncpa [#allocation7], 0
    %12 = vsyncpa [#allocation5], 0
    %s13 = scalar_lea.sflag [#allocation5], 1
    %14 = vsyncpa %s13, 0
    loop: start=0, step=1, limit=4
    $region2: #{tpu_custom_call.1} parent=1 // loop_pre_header
      _
    $region3: #{tpu_custom_call.1} parent=1 // loop_header
      %s16 = sphi 0, %s20
      %p17 = scmp.ge.s32.totalorder %s16, 4
      %s26 = sphi 0, %s28
      %s29 = sphi 0, %s26
      %s30 = sphi 0, %s29
      %s46 = sphi 0, %s30
      %s50 = sphi 0, %s50
      %s52 = sphi 0, %s50
      %s53 = sphi 0, %s52
      %s67 = sphi 0, %s53
      %s71 = sphi 0, %s71
      %s73 = sphi 0, %s71
      %s74 = sphi 0, %s73
      %s88 = sphi 0, %s74
      %s94 = sphi 0, %s96
      %s97 = sphi 0, %s94
      %s98 = sphi 0, %s97
      %s114 = sphi 0, %s98
    $region4: #{tpu_custom_call.1} parent=1 // loop_header_branch
      %19 = sbr.rel (%p17) target = $region8
    $region5: #{tpu_custom_call.1} parent=1 // loop_body
      %s21 = ssub.s32 %s16, 1
      %s22 = ssub.s32 %s16, 2
      %s23 = sadd.s32 %s16, 1
      %s24 = ssub.s32 %s16, %s23
      %p25 = scmp.eq.s32.totalorder %s24, 0
      %s27 = sadd.s32 %s26, 1
      %s28 = scalar_select %p25, %s26, %s27
      %p31 = pneg %p25
      %p32 = scmp.eq.s32.totalorder %s16, 1
      %p33 = por %p31, %p32
      %p34 = scmp.ne.s32.totalorder %s26, %s29
      %p35 = scmp.eq.s32.totalorder %s16, 0
      %p36 = por %p34, %p35
      %p37 = scmp.ne.s32.totalorder %s26, %s29
      %p38 = scmp.eq.s32.totalorder %s21, 1
      %p39 = por %p37, %p38
      %p40 = scmp.ne.s32.totalorder %s29, %s30
      %p41 = scmp.eq.s32.totalorder %s21, 0
      %p42 = por %p40, %p41
      %p43 = scmp.ne.s32.totalorder %s29, %s30
      %p44 = scmp.eq.s32.totalorder %s22, 1
      %p45 = por %p43, %p44
      %p47 = scmp.ne.s32.totalorder %s30, %s46
      %p48 = scmp.eq.s32.totalorder %s22, 0
      %p49 = por %p47, %p48
      %s51 = sadd.s32 %s50, 1
      %p54 = scmp.eq.s32.totalorder %s16, 1
      %p55 = scmp.ne.s32.totalorder %s50, %s52
      %p56 = scmp.eq.s32.totalorder %s16, 0
      %p57 = por %p55, %p56
      %p58 = scmp.ne.s32.totalorder %s50, %s52
      %p59 = scmp.eq.s32.totalorder %s21, 1
      %p60 = por %p58, %p59
      %p61 = scmp.ne.s32.totalorder %s52, %s53
      %p62 = scmp.eq.s32.totalorder %s21, 0
      %p63 = por %p61, %p62
      %p64 = scmp.ne.s32.totalorder %s52, %s53
      %p65 = scmp.eq.s32.totalorder %s22, 1
      %p66 = por %p64, %p65
      %p68 = scmp.ne.s32.totalorder %s53, %s67
      %p69 = scmp.eq.s32.totalorder %s22, 0
      %p70 = por %p68, %p69
      %s72 = sadd.s32 %s71, 1
      %p75 = scmp.eq.s32.totalorder %s16, 1
      %p76 = scmp.ne.s32.totalorder %s71, %s73
      %p77 = scmp.eq.s32.totalorder %s16, 0
      %p78 = por %p76, %p77
      %p79 = scmp.ne.s32.totalorder %s71, %s73
      %p80 = scmp.eq.s32.totalorder %s21, 1
      %p81 = por %p79, %p80
      %p82 = scmp.ne.s32.totalorder %s73, %s74
      %p83 = scmp.eq.s32.totalorder %s21, 0
      %p84 = por %p82, %p83
      %p85 = scmp.ne.s32.totalorder %s73, %s74
      %p86 = scmp.eq.s32.totalorder %s22, 1
      %p87 = por %p85, %p86
      %p89 = scmp.ne.s32.totalorder %s74, %s88
      %p90 = scmp.eq.s32.totalorder %s22, 0
      %p91 = por %p89, %p90
      %s92 = ssub.s32 %s16, %s23
      %p93 = scmp.eq.s32.totalorder %s92, 0
      %s95 = sadd.s32 %s94, 1
      %s96 = scalar_select %p93, %s94, %s95
      %p99 = pneg %p93
      %p100 = scmp.eq.s32.totalorder %s16, 1
      %p101 = por %p99, %p100
      %p102 = scmp.ne.s32.totalorder %s94, %s97
      %p103 = scmp.eq.s32.totalorder %s16, 0
      %p104 = por %p102, %p103
      %p105 = scmp.ne.s32.totalorder %s94, %s97
      %p106 = scmp.eq.s32.totalorder %s21, 1
      %p107 = por %p105, %p106
      %p108 = scmp.ne.s32.totalorder %s97, %s98
      %p109 = scmp.eq.s32.totalorder %s21, 0
      %p110 = por %p108, %p109
      %p111 = scmp.ne.s32.totalorder %s97, %s98
      %p112 = scmp.eq.s32.totalorder %s22, 1
      %p113 = por %p111, %p112
      %p115 = scmp.ne.s32.totalorder %s98, %s114
      %p116 = scmp.eq.s32.totalorder %s22, 0
      %p117 = por %p115, %p116
      %p118 = scmp.le.s32.totalorder 1, %s16
      %p119 = scmp.lt.s32.totalorder %s16, 3
      %p120 = pnand %p118, %p119
      %p121 = pneg %p120
      // Predicated region
      $region9: #{tpu_custom_call.1} parent=5 // pred_check
        _
      $region10: #{tpu_custom_call.1} parent=5 // pred_check_branch
        %123 = sbr.rel (%p120) target = $region12
      $region11: #{tpu_custom_call.1} parent=5 // pred_region
        %s124 = ssub.s32 %s16, 1
        // Predicated region
        $region13: #{tpu_custom_call.1} parent=11 // pred_check
          %p125 = pneg %p63
        $region14: #{tpu_custom_call.1} parent=11 // pred_check_branch
          %127 = sbr.rel (%p125) target = $region16
        $region15: #{tpu_custom_call.1} parent=11 // pred_region
          %s129 = ssub.s32 128, 128
          %130 = vsyncadd [#allocation7], %s129
          %s132 = sshll.u32 [#allocation6], 4
          %s133 = int_to_ptr.vmem [resolvable:$true] %s132
          %135 = dma.hbm_to_vmem [thread:$0]  %s1, 128, %s133, [#allocation7]
        $region16: #{tpu_custom_call.1} parent=11 // pred_fallthru
          _
        // Predicated region
        $region17: #{tpu_custom_call.1} parent=11 // pred_check
          %p136 = pneg %p84
        $region18: #{tpu_custom_call.1} parent=11 // pred_check_branch
          %138 = sbr.rel (%p136) target = $region20
        $region19: #{tpu_custom_call.1} parent=11 // pred_region
          %s140 = ssub.s32 128, 128
          %141 = vsyncadd [#allocation7], %s140
          %s143 = sshll.u32 [#allocation8], 4
          %s144 = int_to_ptr.vmem [resolvable:$true] %s143
          %146 = dma.hbm_to_vmem [thread:$0]  %s2, 128, %s144, [#allocation7]
        $region20: #{tpu_custom_call.1} parent=11 // pred_fallthru
          _
      $region12: #{tpu_custom_call.1} parent=5 // pred_fallthru
        _
      %p147 = scmp.lt.s32.totalorder %s16, 2
      // Predicated region
      $region21: #{tpu_custom_call.1} parent=5 // pred_check
        %p148 = pneg %p147
      $region22: #{tpu_custom_call.1} parent=5 // pred_check_branch
        %150 = sbr.rel (%p148) target = $region24
      $region23: #{tpu_custom_call.1} parent=5 // pred_region
        // Predicated region
        $region25: #{tpu_custom_call.1} parent=23 // pred_check
          %p151 = pneg %p36
        $region26: #{tpu_custom_call.1} parent=23 // pred_check_branch
          %153 = sbr.rel (%p151) target = $region28
        $region27: #{tpu_custom_call.1} parent=23 // pred_region
          %s154 = sand.u32 %s26, 1
          %s155 = scalar_lea.sflag [#allocation4], %s154
          %s156 = sand.u32 %s26, 1
          %s157 = smul.addr %s156, 16
          %s158 = scalar_lea.vmem [#allocation3], %s157
          %s160 = ssub.s32 256, 256
          %161 = vsyncadd %s155, %s160
          %s162 = smul.addr %s16, 2
          %s163 = smul.addr %s162, 128
          %s164 = scalar_lea.hbm %s0, %s163
          %s166 = sshll.u32 %s158, 4
          %s167 = int_to_ptr.vmem [resolvable:$true] %s166
          %169 = dma.hbm_to_vmem [thread:$0]  %s164, 256, %s167, %s155
        $region28: #{tpu_custom_call.1} parent=23 // pred_fallthru
          _
      $region24: #{tpu_custom_call.1} parent=5 // pred_fallthru
        _
      %p170 = scmp.le.s32.totalorder 1, %s16
      %p171 = scmp.lt.s32.totalorder %s16, 3
      %p172 = pnand %p170, %p171
      %p173 = pneg %p172
      // Predicated region
      $region29: #{tpu_custom_call.1} parent=5 // pred_check
        _
      $region30: #{tpu_custom_call.1} parent=5 // pred_check_branch
        %175 = sbr.rel (%p172) target = $region32
      $region31: #{tpu_custom_call.1} parent=5 // pred_region
        %s176 = ssub.s32 %s16, 1
        %s177 = sand.u32 %s29, 1
        %s178 = scalar_lea.sflag [#allocation4], %s177
        %s179 = sand.u32 %s29, 1
        %s180 = smul.addr %s179, 16
        %s181 = scalar_lea.vmem [#allocation3], %s180
        // Predicated region
        $region33: #{tpu_custom_call.1} parent=31 // pred_check
          %p182 = pneg %p42
        $region34: #{tpu_custom_call.1} parent=31 // pred_check_branch
          %184 = sbr.rel (%p182) target = $region36
        $region35: #{tpu_custom_call.1} parent=31 // pred_region
          %185 = dma.done %s178, 256
        $region36: #{tpu_custom_call.1} parent=31 // pred_fallthru
          _
        // Predicated region
        $region37: #{tpu_custom_call.1} parent=31 // pred_check
          %p186 = pneg %p63
        $region38: #{tpu_custom_call.1} parent=31 // pred_check_branch
          %188 = sbr.rel (%p186) target = $region40
        $region39: #{tpu_custom_call.1} parent=31 // pred_region
          %189 = dma.done [#allocation7], 128
        $region40: #{tpu_custom_call.1} parent=31 // pred_fallthru
          _
        // Predicated region
        $region41: #{tpu_custom_call.1} parent=31 // pred_check
          %p190 = pneg %p84
        $region42: #{tpu_custom_call.1} parent=31 // pred_check_branch
          %192 = sbr.rel (%p190) target = $region44
        $region43: #{tpu_custom_call.1} parent=31 // pred_region
          %193 = dma.done [#allocation7], 128
        $region44: #{tpu_custom_call.1} parent=31 // pred_fallthru
          _
        %s194 = sand.u32 %s29, 1
        %s195 = scalar_lea.sflag [#allocation4], %s194
        %s196 = sand.u32 %s29, 1
        %s197 = smul.addr %s196, 16
        %s198 = scalar_lea.vmem [#allocation3], %s197
        %p199 = pneg %p42
        %p200 = pneg %p39
        %p201 = pneg %p63
        %p202 = pneg %p60
        %p203 = pneg %p84
        %p204 = pneg %p81
        %p205 = pneg %p110
        %p206 = pneg %p107
        %s207 = sand.u32 %s97, 1
        %s208 = scalar_lea.sflag [#allocation5], %s207
        %s209 = sand.u32 %s97, 1
        %s210 = smul.addr %s209, 8
        %s211 = scalar_lea.vmem [#allocation9], %s210
        %v212 = vld [vmem:[%s181] sm:$0xff]
        %v213 = vmax.f32 %v212, 0.0
        %214 = vst [vmem:[#allocation2] sm:$0xff] %v213
        %v215 = vld [vmem:[%s181] sm:$0xff]
        %v216 = vld [vmem:[%s181 + $0x8] sm:$0xff]
        %v217 = vmax.f32 %v215, 0.0
        %v218 = vmax.f32 %v216, 0.0
        %221 = vrot.lane.b32.xlu0 %v217, 126
        %v222 = vpop.permute.xlu0 %221
        %223 = vrot.lane.b32.xlu0 %v218, 126
        %v224 = vpop.permute.xlu0 %223
        %vm225 = vcmask 1031168
        %v226 = vsel %vm225, %v222, %v224
        %228 = vst [vmem:[#allocation2 + $0x8] sm:$0xff] %v226
        %v229 = vld [vmem:[%s181] sm:$0xff]
        %v230 = vld [vmem:[%s181 + $0x8] sm:$0xff]
        %v231 = vmax.f32 %v229, 0.0
        %v232 = vmax.f32 %v230, 0.0
        %235 = vrot.lane.b32.xlu0 %v231, 124
        %v236 = vpop.permute.xlu0 %235
        %237 = vrot.lane.b32.xlu0 %v232, 124
        %v238 = vpop.permute.xlu0 %237
        %vm239 = vcmask 1014784
        %v240 = vsel %vm239, %v236, %v238
        %242 = vst [vmem:[#allocation2 + $0x10] sm:$0xff] %v240
        %v243 = vld [vmem:[#allocation6] sm:$0xff]
        %v244 = vld [vmem:[#allocation8] sm:$0xff]
        %v245 = vld [vmem:[#allocation2] sm:$0xff]
        %v246 = vld [vmem:[#allocation2 + $0x8] sm:$0xff]
        %v247 = vld [vmem:[#allocation2 + $0x10] sm:$0xff]
        %249 = vset.pattern.permute.xlu0 0
        %250 = vperm.xlu0 %249, %v244
        %v251 = vpop.permute.xlu0 %250
        %vm253 = vcmask 195584
        %v255 = vsel %vm253, %v243, 0
        %257 = vmatprep.subr.mxu0 0.0
        %258 = vmatpush1.msra.mxu0 %v245
        %259 = vmatprep.subr.mxu0 0.0
        %260 = vmatpush1.msra.mxu0 %v246
        %261 = vmatprep.subr.mxu0 0.0
        %262 = vmatpush1.msra.mxu0 %v247
        %263 = vmatprep.subr.mxu0 0.0
        %264 = vmatpush1.msra.mxu0 0.0
        %265 = vmatprep.subr.mxu0 0.0
        %266 = vmatpush1.msra.mxu0 0.0
        %267 = vmatprep.subr.mxu0 0.0
        %268 = vmatpush1.msra.mxu0 0.0
        %269 = vmatprep.subr.mxu0 0.0
        %270 = vmatpush1.msra.mxu0 0.0
        %271 = vmatprep.subr.mxu0 0.0
        %272 = vmatpush1.msra.mxu0 0.0
        %273 = vmatprep.subr.mxu0 0.0
        %274 = vmatpush1.msra.mxu0 0.0
        %275 = vmatprep.subr.mxu0 0.0
        %276 = vmatpush1.msra.mxu0 0.0
        %277 = vmatprep.subr.mxu0 0.0
        %278 = vmatpush1.msra.mxu0 0.0
        %279 = vmatprep.subr.mxu0 0.0
        %280 = vmatpush1.msra.mxu0 0.0
        %281 = vmatprep.subr.mxu0 0.0
        %282 = vmatpush1.msra.mxu0 0.0
        %283 = vmatprep.subr.mxu0 0.0
        %284 = vmatpush1.msra.mxu0 0.0
        %285 = vmatprep.subr.mxu0 0.0
        %286 = vmatpush1.msra.mxu0 0.0
        %287 = vmatprep.subr.mxu0 0.0
        %288 = vmatpush1.msra.mxu0 0.0
        %289 = vmatprep.subr.mxu0 0.0
        %290 = vmatpush1.msra.mxu0 0.0
        %291 = vmatprep.subr.mxu0 0.0
        %292 = vmatpush1.msra.mxu0 0.0
        %293 = vmatprep.subr.mxu0 0.0
        %294 = vmatpush1.msra.mxu0 0.0
        %295 = vmatprep.subr.mxu0 0.0
        %296 = vmatpush1.msra.mxu0 0.0
        %297 = vmatprep.subr.mxu0 0.0
        %298 = vmatpush1.msra.mxu0 0.0
        %299 = vmatprep.subr.mxu0 0.0
        %300 = vmatpush1.msra.mxu0 0.0
        %301 = vmatprep.subr.mxu0 0.0
        %302 = vmatpush1.msra.mxu0 0.0
        %303 = vmatprep.subr.mxu0 0.0
        %304 = vmatpush1.msra.mxu0 0.0
        %305 = vmatprep.subr.mxu0 0.0
        %306 = vmatpush1.msra.mxu0 0.0
        %307 = vmatprep.subr.mxu0 0.0
        %308 = vmatpush1.msra.mxu0 0.0
        %309 = vmatprep.subr.mxu0 0.0
        %310 = vmatpush1.msra.mxu0 0.0
        %311 = vmatprep.subr.mxu0 0.0
        %312 = vmatpush1.msra.mxu0 0.0
        %313 = vmatprep.subr.mxu0 0.0
        %314 = vmatpush1.msra.mxu0 0.0
        %315 = vmatprep.subr.mxu0 0.0
        %316 = vmatpush1.msra.mxu0 0.0
        %317 = vmatprep.subr.mxu0 0.0
        %318 = vmatpush1.msra.mxu0 0.0
        %319 = vmatprep.subr.mxu0 0.0
        %320 = vmatpush1.msra.mxu0 0.0
        %321 = vmatprep.mubr.f32.mxu0 0.0
        %322 = vmatmul.mubr.f32.gmra.mrb[0].mxu0 %v255
        %v323 = vpop.f32.mrb[0].mxu0
        %v324 = vadd.f32 %v251, %v323
        %v325 = vpop.f32.mrb[0].mxu0
        %326 = vdwg.mxu0
        %327 = vst [vmem:[%s211] sm:$0xff] %v324
        %s328 = sand.u32 %s97, 1
        %s329 = scalar_lea.sflag [#allocation5], %s328
        %s330 = sand.u32 %s97, 1
        %s331 = smul.addr %s330, 8
        %s332 = scalar_lea.vmem [#allocation9], %s331
        // Predicated region
        $region45: #{tpu_custom_call.1} parent=31 // pred_check
          %p333 = pneg %p107
        $region46: #{tpu_custom_call.1} parent=31 // pred_check_branch
          %335 = sbr.rel (%p333) target = $region48
        $region47: #{tpu_custom_call.1} parent=31 // pred_region
          %s337 = ssub.s32 128, 128
          %338 = vsyncadd %s329, %s337
          %s339 = smul.addr %s21, 128
          %s340 = scalar_lea.hbm %s3, %s339
          %s342 = sshll.u32 %s332, 4
          %s343 = int_to_ptr.vmem [resolvable:$true] %s342
          %345 = dma.vmem_to_hbm [thread:$0]  %s343, 128, %s340, %s329
        $region48: #{tpu_custom_call.1} parent=31 // pred_fallthru
          _
      $region32: #{tpu_custom_call.1} parent=5 // pred_fallthru
        _
      %p346 = scmp.le.s32.totalorder 2, %s16
      // Predicated region
      $region49: #{tpu_custom_call.1} parent=5 // pred_check
        %p347 = pneg %p346
      $region50: #{tpu_custom_call.1} parent=5 // pred_check_branch
        %349 = sbr.rel (%p347) target = $region52
      $region51: #{tpu_custom_call.1} parent=5 // pred_region
        %s350 = ssub.s32 %s16, 2
        // Predicated region
        $region53: #{tpu_custom_call.1} parent=51 // pred_check
          %p351 = pneg %p113
        $region54: #{tpu_custom_call.1} parent=51 // pred_check_branch
          %353 = sbr.rel (%p351) target = $region56
        $region55: #{tpu_custom_call.1} parent=51 // pred_region
          %s354 = sand.u32 %s98, 1
          %s355 = scalar_lea.sflag [#allocation5], %s354
          %s356 = sand.u32 %s98, 1
          %s357 = smul.addr %s356, 8
          %s358 = scalar_lea.vmem [#allocation9], %s357
          %359 = dma.done %s355, 128
        $region56: #{tpu_custom_call.1} parent=51 // pred_fallthru
          _
      $region52: #{tpu_custom_call.1} parent=5 // pred_fallthru
        _
    $region6: #{tpu_custom_call.1} parent=1 // loop_footer
      %s20 = sadd.s32 1, %s16
    $region7: #{tpu_custom_call.1} parent=1 // loop_footer_branch
      %15 = sbr.rel target = $region3
    $region8: #{tpu_custom_call.1} parent=1 // loop_exit
      _
    %360 = vsyncpa [#allocation4], 1
    %s361 = scalar_lea.sflag [#allocation4], 1
    %362 = vsyncpa %s361, 1
    %363 = vsyncpa [#allocation7], 1
    %364 = vsyncpa [#allocation5], 1
    %s365 = scalar_lea.sflag [#allocation5], 1
    %366 = vsyncpa %s365, 1

</llo_original>
